<compile_context>
chip_gen: v6e
topology: v6e:2x2x1
jax: 0.10.0
libtpu: 0.0.40
codegen_flags: <defaults>
</compile_context>

<pallas_src>
import jax
import jax.numpy as jnp
from jax.experimental import pallas as pl
from jax.experimental.pallas import tpu as pltpu

HIDDEN = 64


def _round_up(x, m):
    return ((x + m - 1) // m) * m


def _mlp_kernel(x_ref, w1_ref, b1_ref, w2_ref, b2_ref, w3_ref, b3_ref, o_ref):
    """Fused per-tile MLP, batch on lanes:  out^T = W3 @ relu(W2 @ relu(W1 @ x^T + b1) + b2) + b3."""
    mxu = w1_ref.dtype                       # f32 (exact) or bf16 (fast MXU path)
    # One XLU transpose per tile: (TB, in_dim) -> (in_dim, TB). Puts batch on the 128-wide
    # lane axis so every intermediate and the output store are lane-dense.
    xT = x_ref[...].T.astype(mxu)
    # layer 1: (64, in_dim) @ (in_dim, TB) -> (64, TB), f32 accumulate on the MXU.
    h1 = jnp.dot(w1_ref[...], xT, preferred_element_type=jnp.float32)
    h1 = jnp.maximum(h1 + b1_ref[...], 0.0)              # bias + ReLU in f32 on the VPU
    # layer 2: (64, 64) @ (64, TB) -> (64, TB)
    h2 = jnp.dot(w2_ref[...], h1.astype(mxu), preferred_element_type=jnp.float32)
    h2 = jnp.maximum(h2 + b2_ref[...], 0.0)
    # layer 3: (out_dim, 64) @ (64, TB) -> (out_dim, TB)   (no activation, matches PyTorch)
    out = jnp.dot(w3_ref[...], h2.astype(mxu), preferred_element_type=jnp.float32) + b3_ref[...]
    o_ref[...] = out.astype(o_ref.dtype)


def feed_forward_nn(obs, params, *, block_batch=4096, mxu_dtype=jnp.float32,
                    xla_fastpath_max_batch=0):
    """Forward pass of FeedForwardNN.

    obs:    (batch, in_dim) f32.
    params: PyTorch-native layout — weights (fan_out, fan_in), biases (fan_out, 1), all f32.
    mxu_dtype: jnp.float32 (bit-faithful) or jnp.bfloat16 (faster MXU, f32 accumulate).
    xla_fastpath_max_batch: if batch <= this, skip pallas_call (launch-overhead-bound regime).
    """
    w1, b1, w2, b2, w3, b3 = (params["w1"], params["b1"], params["w2"],
                              params["b2"], params["w3"], params["b3"])
    batch, in_dim = obs.shape
    hidden = w1.shape[0]
    out_dim = w3.shape[0]

    # Small-batch fast path: below ~1-2K rows the kernel is pure launch/step overhead.
    if batch <= xla_fastpath_max_batch:
        return _reference(obs, params)

    # --- batch tile selection (lane-padding-aware VMEM budget) ---------------
    in_pad = _round_up(in_dim, 128)                  # obs lanes pad to 128
    per_row_bytes = (
        2 * in_pad * 4                               # double-buffered obs tile (f32, lane-padded)
        + 2 * _round_up(out_dim, 8) * 4              # double-buffered (out_dim, TB) output tile
        + in_pad * 4                                 # in-kernel transposed obs copy
        + 2 * hidden * 4                             # h1 / h2 f32 intermediates
    )
    vmem_budget = 12 * 1024 * 1024                   # headroom under v5e's 16 MiB scoped default
    tb_cap = max(128, (vmem_budget // per_row_bytes) // 128 * 128)
    tb = min(block_batch, tb_cap, _round_up(batch, 128))
    tb = max(128, _round_up(tb, 128))                # batch lives on lanes -> multiple of 128
    # v7x megacore: if the whole (large) batch would fit in one tile, split into >=2 tiles so
    # dimension_semantics=("parallel",) can shard across both TensorCores.
    if batch > 128 and _round_up(batch, tb) == tb:
        tb = max(128, _round_up((batch + 1) // 2, 128))

    padded = _round_up(batch, tb)
    if padded != batch:
        obs = jnp.pad(obs, ((0, padded - batch), (0, 0)))
    grid = (padded // tb,)

    # Optional bf16 MXU operands (f32 accumulate). Biases stay f32 for exact VPU math.
    if mxu_dtype != jnp.float32:
        w1, w2, w3 = (w.astype(mxu_dtype) for w in (w1, w2, w3))

    def const(arr):
        # Full-array block, same block every grid step -> DMA'd once, VMEM-resident.
        return pl.BlockSpec(arr.shape, lambda i: (0, 0))

    flops = 2 * padded * (in_dim * hidden + hidden * hidden + hidden * out_dim)
    bytes_accessed = (
        padded * in_dim * 4 + padded * out_dim * 4
        + sum(int(a.size) * a.dtype.itemsize for a in (w1, b1, w2, b2, w3, b3))
    )

    out_t = pl.pallas_call(
        _mlp_kernel,
        out_shape=jax.ShapeDtypeStruct((out_dim, padded), jnp.float32),
        grid=grid,
        in_specs=[
            pl.BlockSpec((tb, in_dim), lambda i: (i, 0)),   # obs tile, auto double-buffered
            const(w1), const(b1),
            const(w2), const(b2),
            const(w3), const(b3),
        ],
        out_specs=pl.BlockSpec((out_dim, tb), lambda i: (0, i)),   # lane-dense output block
        compiler_params=pltpu.CompilerParams(
            dimension_semantics=("parallel",),   # shard batch tiles across v7x's 2 TCs
        ),
        cost_estimate=pl.CostEstimate(flops=flops, transcendentals=0,
                                      bytes_accessed=bytes_accessed),
    )(obs, w1, b1, w2, b2, w3, b3)

    # (out_dim, padded) -> (batch, out_dim); the transpose is a tiny XLA op.
    return out_t[:, :batch].T


def init_params(key, in_dim, out_dim, hidden=HIDDEN):
    """PyTorch nn.Linear-style init; weights (fan_out, fan_in), biases (fan_out, 1)."""
    def linear(k, fan_in, fan_out):
        kw, kb = jax.random.split(k)
        bound = 1.0 / jnp.sqrt(fan_in)
        w = jax.random.uniform(kw, (fan_out, fan_in), jnp.float32, -bound, bound)
        b = jax.random.uniform(kb, (fan_out, 1), jnp.float32, -bound, bound)
        return w, b

    k1, k2, k3 = jax.random.split(key, 3)
    w1, b1 = linear(k1, in_dim, hidden)
    w2, b2 = linear(k2, hidden, hidden)
    w3, b3 = linear(k3, hidden, out_dim)
    return {"w1": w1, "b1": b1, "w2": w2, "b2": b2, "w3": w3, "b3": b3}


def _reference(obs, p):
    h = jnp.maximum(obs @ p["w1"].T + p["b1"][:, 0], 0.0)
    h = jnp.maximum(h @ p["w2"].T + p["b2"][:, 0], 0.0)
    return h @ p["w3"].T + p["b3"][:, 0]


if __name__ == "__main__":
    key = jax.random.PRNGKey(0)
    k_obs, k_obs2, k_params = jax.random.split(key, 3)

    in_dim, out_dim = 16, 4
    params = init_params(k_params, in_dim, out_dim)

    # Small PPO-style shape (single-tile path).
    batch = 8
    obs = jax.random.normal(k_obs, (batch, in_dim), dtype=jnp.float32)
    out = jax.block_until_ready(feed_forward_nn(obs, params))
    ref = _reference(obs, params)
    assert out.shape == (batch, out_dim)
    assert jnp.allclose(out, ref, atol=1e-5), "mismatch vs reference (batch=8, f32)"

    # Ragged batch -> tiled grid + padding path.
    batch2 = 300
    obs2 = jax.random.normal(k_obs2, (batch2, in_dim), dtype=jnp.float32)
    out2 = jax.block_until_ready(feed_forward_nn(obs2, params, block_batch=128))
    ref2 = _reference(obs2, params)
    assert out2.shape == (batch2, out_dim)
    assert jnp.allclose(out2, ref2, atol=1e-5), "mismatch vs reference (batch=300, f32)"

    # bf16 MXU-operand fast path (f32 accumulate) -> looser tolerance by design.
    out3 = jax.block_until_ready(
        feed_forward_nn(obs2, params, block_batch=128, mxu_dtype=jnp.bfloat16))
    assert out3.shape == (batch2, out_dim)
    assert jnp.allclose(out3, ref2, atol=3e-2, rtol=3e-2), "mismatch vs reference (bf16 MXU)"

    print("KERNEL_OK")
</pallas_src>

<mosaic_0001>
module attributes {stable_mosaic.version = 11 : i64} {
  func.func @_mlp_kernel(%arg0: i32, %arg1: memref<128x16xf32, #tpu.memory_space<vmem>>, %arg2: memref<64x16xf32, #tpu.memory_space<vmem>>, %arg3: memref<64x1xf32, #tpu.memory_space<vmem>>, %arg4: memref<64x64xf32, #tpu.memory_space<vmem>>, %arg5: memref<64x1xf32, #tpu.memory_space<vmem>>, %arg6: memref<4x64xf32, #tpu.memory_space<vmem>>, %arg7: memref<4x1xf32, #tpu.memory_space<vmem>>, %arg8: memref<4x128xf32, #tpu.memory_space<vmem>>) attributes {dimension_semantics = [#tpu.dimension_semantics<parallel>], iteration_bounds = array<i64: 1>, scalar_prefetch = 0 : i64, scratch_operands = 0 : i64, tpu.core_type = #tpu.core_type<tc>, window_params = [{transform_indices = @transform_0, window_bounds = array<i64: 128, 16>}, {pipeline_mode = #tpu.pipeline_mode<synchronous>, transform_indices = @transform_1, window_bounds = array<i64: 64, 16>}, {pipeline_mode = #tpu.pipeline_mode<synchronous>, transform_indices = @transform_2, window_bounds = array<i64: 64, 1>}, {pipeline_mode = #tpu.pipeline_mode<synchronous>, transform_indices = @transform_3, window_bounds = array<i64: 64, 64>}, {pipeline_mode = #tpu.pipeline_mode<synchronous>, transform_indices = @transform_4, window_bounds = array<i64: 64, 1>}, {pipeline_mode = #tpu.pipeline_mode<synchronous>, transform_indices = @transform_5, window_bounds = array<i64: 4, 64>}, {pipeline_mode = #tpu.pipeline_mode<synchronous>, transform_indices = @transform_6, window_bounds = array<i64: 4, 1>}, {transform_indices = @transform_7, window_bounds = array<i64: 4, 128>}]} {
    %c0 = arith.constant 0 : index
    %c0_0 = arith.constant 0 : index
    %0 = vector.load %arg1[%c0, %c0_0] : memref<128x16xf32, #tpu.memory_space<vmem>>, vector<128x16xf32>
    %1 = tpu.transpose %0, [1, 0] : vector<128x16xf32> -> vector<16x128xf32>
    %c0_1 = arith.constant 0 : index
    %c0_2 = arith.constant 0 : index
    %2 = vector.load %arg2[%c0_1, %c0_2] : memref<64x16xf32, #tpu.memory_space<vmem>>, vector<64x16xf32>
    %cst = arith.constant dense<0.000000e+00> : vector<64x128xf32>
    %3 = tpu.matmul %2, %1, %cst {dimension_numbers = #tpu.dot_dimension_numbers<[1], [0], [0], [1], [0, 0, 1, 1], [], []>} : vector<64x16xf32>, vector<16x128xf32>, vector<64x128xf32> -> vector<64x128xf32>
    %c0_3 = arith.constant 0 : index
    %c0_4 = arith.constant 0 : index
    %4 = vector.load %arg3[%c0_3, %c0_4] : memref<64x1xf32, #tpu.memory_space<vmem>>, vector<64x1xf32>
    %5 = vector.broadcast %4 : vector<64x1xf32> to vector<64x128xf32>
    %6 = arith.addf %3, %5 : vector<64x128xf32>
    %cst_5 = arith.constant 0.000000e+00 : f32
    %7 = vector.broadcast %cst_5 : f32 to vector<64x128xf32>
    %8 = arith.maximumf %6, %7 : vector<64x128xf32>
    %c0_6 = arith.constant 0 : index
    %c0_7 = arith.constant 0 : index
    %9 = vector.load %arg4[%c0_6, %c0_7] : memref<64x64xf32, #tpu.memory_space<vmem>>, vector<64x64xf32>
    %cst_8 = arith.constant dense<0.000000e+00> : vector<64x128xf32>
    %10 = tpu.matmul %9, %8, %cst_8 {dimension_numbers = #tpu.dot_dimension_numbers<[1], [0], [0], [1], [0, 0, 1, 1], [], []>} : vector<64x64xf32>, vector<64x128xf32>, vector<64x128xf32> -> vector<64x128xf32>
    %c0_9 = arith.constant 0 : index
    %c0_10 = arith.constant 0 : index
    %11 = vector.load %arg5[%c0_9, %c0_10] : memref<64x1xf32, #tpu.memory_space<vmem>>, vector<64x1xf32>
    %12 = vector.broadcast %11 : vector<64x1xf32> to vector<64x128xf32>
    %13 = arith.addf %10, %12 : vector<64x128xf32>
    %cst_11 = arith.constant 0.000000e+00 : f32
    %14 = vector.broadcast %cst_11 : f32 to vector<64x128xf32>
    %15 = arith.maximumf %13, %14 : vector<64x128xf32>
    %c0_12 = arith.constant 0 : index
    %c0_13 = arith.constant 0 : index
    %16 = vector.load %arg6[%c0_12, %c0_13] : memref<4x64xf32, #tpu.memory_space<vmem>>, vector<4x64xf32>
    %cst_14 = arith.constant dense<0.000000e+00> : vector<4x128xf32>
    %17 = tpu.matmul %16, %15, %cst_14 {dimension_numbers = #tpu.dot_dimension_numbers<[1], [0], [0], [1], [0, 0, 1, 1], [], []>} : vector<4x64xf32>, vector<64x128xf32>, vector<4x128xf32> -> vector<4x128xf32>
    %c0_15 = arith.constant 0 : index
    %c0_16 = arith.constant 0 : index
    %18 = vector.load %arg7[%c0_15, %c0_16] : memref<4x1xf32, #tpu.memory_space<vmem>>, vector<4x1xf32>
    %19 = vector.broadcast %18 : vector<4x1xf32> to vector<4x128xf32>
    %20 = arith.addf %17, %19 : vector<4x128xf32>
    %c0_17 = arith.constant 0 : index
    %c0_18 = arith.constant 0 : index
    %21 = vector.load %arg8[%c0_17, %c0_18] : memref<4x128xf32, #tpu.memory_space<vmem>>, vector<4x128xf32>
    tpu.vector_store %arg8[%c0_17, %c0_18], %20 {strides = array<i32>} : memref<4x128xf32, #tpu.memory_space<vmem>>, vector<4x128xf32>,
    return
  }
  func.func @transform_0(%arg0: i32) -> (i32, i32) {
    %c0_i32 = arith.constant 0 : i32
    %c0_i32_0 = arith.constant 0 : i32
    return %arg0, %c0_i32 : i32, i32
  }
  func.func @transform_1(%arg0: i32) -> (i32, i32) {
    %c0_i32 = arith.constant 0 : i32
    %c0_i32_0 = arith.constant 0 : i32
    %c0_i32_1 = arith.constant 0 : i32
    return %c0_i32, %c0_i32_0 : i32, i32
  }
  func.func @transform_2(%arg0: i32) -> (i32, i32) {
    %c0_i32 = arith.constant 0 : i32
    %c0_i32_0 = arith.constant 0 : i32
    %c0_i32_1 = arith.constant 0 : i32
    return %c0_i32, %c0_i32_0 : i32, i32
  }
  func.func @transform_3(%arg0: i32) -> (i32, i32) {
    %c0_i32 = arith.constant 0 : i32
    %c0_i32_0 = arith.constant 0 : i32
    %c0_i32_1 = arith.constant 0 : i32
    return %c0_i32, %c0_i32_0 : i32, i32
  }
  func.func @transform_4(%arg0: i32) -> (i32, i32) {
    %c0_i32 = arith.constant 0 : i32
    %c0_i32_0 = arith.constant 0 : i32
    %c0_i32_1 = arith.constant 0 : i32
    return %c0_i32, %c0_i32_0 : i32, i32
  }
  func.func @transform_5(%arg0: i32) -> (i32, i32) {
    %c0_i32 = arith.constant 0 : i32
    %c0_i32_0 = arith.constant 0 : i32
    %c0_i32_1 = arith.constant 0 : i32
    return %c0_i32, %c0_i32_0 : i32, i32
  }
  func.func @transform_6(%arg0: i32) -> (i32, i32) {
    %c0_i32 = arith.constant 0 : i32
    %c0_i32_0 = arith.constant 0 : i32
    %c0_i32_1 = arith.constant 0 : i32
    return %c0_i32, %c0_i32_0 : i32, i32
  }
  func.func @transform_7(%arg0: i32) -> (i32, i32) {
    %c0_i32 = arith.constant 0 : i32
    %c0_i32_0 = arith.constant 0 : i32
    return %c0_i32, %arg0 : i32, i32
  }
}

</mosaic_0001>

<llo_original>
// kernel: tpu_custom_call.1
$region0: #{tpu_custom_call.1}
  #allocation0 [shape = 'u32[]', space=smem, size = 0x4, offset = 0x4, fixed_abs, tag = 'smem constant byte address 0x4 - core index']
  #allocation1 [shape = 'u32[144,128]{1,0:T(1,128)}', space=vmem, size = 0x12000, scoped, tag = 'internal scratch']
  %s0 = inlined_call_operand.vmem [shape: f32[128,16], index: 0, kind: input, shape index: {}]
  %s1 = inlined_call_operand.vmem [shape: f32[64,16], index: 1, kind: input, shape index: {}]
  %s2 = inlined_call_operand.vmem [shape: f32[64,1], index: 2, kind: input, shape index: {}]
  %s3 = inlined_call_operand.vmem [shape: f32[64,64], index: 3, kind: input, shape index: {}]
  %s4 = inlined_call_operand.vmem [shape: f32[64,1], index: 4, kind: input, shape index: {}]
  %s5 = inlined_call_operand.vmem [shape: f32[4,64], index: 5, kind: input, shape index: {}]
  %s6 = inlined_call_operand.vmem [shape: f32[4,1], index: 6, kind: input, shape index: {}]
  %s7 = inlined_call_operand.hbm [shape: f32[4,128], index: 7, kind: output, shape index: {}]
  %s8 = sld [smem:[#allocation0]]
  $region38: #{tpu_custom_call.1} parent=0
    _
  %s10 = ssub.s32 1, %s8
  %s11 = scalar_select 0, %s10, %s8
  $region1: #{tpu_custom_call.1} parent=0
    #allocation2 [shape = 'u8[2048]{0}', space=vmem, size = 0x800, scoped, tag = 'output window, operand 0, single buffered']
    #allocation3 [shape = 's32[1]{0}', space=sflag, size = 0x4, scoped, tag = 'scoped memory for tpu_custom_call.1']
    %12 = vsyncpa [#allocation3], 0
    // Predicated region
    $region2: #{tpu_custom_call.1} parent=1 // pred_check
      _
    $region3: #{tpu_custom_call.1} parent=1 // pred_check_branch
      %14 = sbr.rel (0) target = $region5
    $region4: #{tpu_custom_call.1} parent=1 // pred_region
      _
    $region5: #{tpu_custom_call.1} parent=1 // pred_fallthru
      _
    // Predicated region
    $region6: #{tpu_custom_call.1} parent=1 // pred_check
      _
    $region7: #{tpu_custom_call.1} parent=1 // pred_check_branch
      %16 = sbr.rel (0) target = $region9
    $region8: #{tpu_custom_call.1} parent=1 // pred_region
      _
    $region9: #{tpu_custom_call.1} parent=1 // pred_fallthru
      _
    // Predicated region
    $region10: #{tpu_custom_call.1} parent=1 // pred_check
      _
    $region11: #{tpu_custom_call.1} parent=1 // pred_check_branch
      %18 = sbr.rel (0) target = $region13
    $region12: #{tpu_custom_call.1} parent=1 // pred_region
      _
    $region13: #{tpu_custom_call.1} parent=1 // pred_fallthru
      _
    // Predicated region
    $region14: #{tpu_custom_call.1} parent=1 // pred_check
      _
    $region15: #{tpu_custom_call.1} parent=1 // pred_check_branch
      %20 = sbr.rel (0) target = $region17
    $region16: #{tpu_custom_call.1} parent=1 // pred_region
      _
    $region17: #{tpu_custom_call.1} parent=1 // pred_fallthru
      _
    // Predicated region
    $region18: #{tpu_custom_call.1} parent=1 // pred_check
      _
    $region19: #{tpu_custom_call.1} parent=1 // pred_check_branch
      %22 = sbr.rel (0) target = $region21
    $region20: #{tpu_custom_call.1} parent=1 // pred_region
      _
    $region21: #{tpu_custom_call.1} parent=1 // pred_fallthru
      _
    // Predicated region
    $region22: #{tpu_custom_call.1} parent=1 // pred_check
      _
    $region23: #{tpu_custom_call.1} parent=1 // pred_check_branch
      %24 = sbr.rel (0) target = $region25
    $region24: #{tpu_custom_call.1} parent=1 // pred_region
      _
    $region25: #{tpu_custom_call.1} parent=1 // pred_fallthru
      _
    // Predicated region
    $region26: #{tpu_custom_call.1} parent=1 // pred_check
      _
    $region27: #{tpu_custom_call.1} parent=1 // pred_check_branch
      %26 = sbr.rel (0) target = $region29
    $region28: #{tpu_custom_call.1} parent=1 // pred_region
      _
    $region29: #{tpu_custom_call.1} parent=1 // pred_fallthru
      _
    %v27 = vld [vmem:[%s0] sm:$0xff]
    %v28 = vld [vmem:[%s0 + $0x8] sm:$0xff]
    %v29 = vld [vmem:[%s0 + $0x10] sm:$0xff]
    %v30 = vld [vmem:[%s0 + $0x18] sm:$0xff]
    %v31 = vld [vmem:[%s0 + $0x20] sm:$0xff]
    %v32 = vld [vmem:[%s0 + $0x28] sm:$0xff]
    %v33 = vld [vmem:[%s0 + $0x30] sm:$0xff]
    %v34 = vld [vmem:[%s0 + $0x38] sm:$0xff]
    %v35 = vld [vmem:[%s0 + $0x40] sm:$0xff]
    %v36 = vld [vmem:[%s0 + $0x48] sm:$0xff]
    %v37 = vld [vmem:[%s0 + $0x50] sm:$0xff]
    %v38 = vld [vmem:[%s0 + $0x58] sm:$0xff]
    %v39 = vld [vmem:[%s0 + $0x60] sm:$0xff]
    %v40 = vld [vmem:[%s0 + $0x68] sm:$0xff]
    %v41 = vld [vmem:[%s0 + $0x70] sm:$0xff]
    %v42 = vld [vmem:[%s0 + $0x78] sm:$0xff]
    %v43 = vld [vmem:[%s1] sm:$0xff]
    %v44 = vld [vmem:[%s1 + $0x8] sm:$0xff]
    %v45 = vld [vmem:[%s1 + $0x10] sm:$0xff]
    %v46 = vld [vmem:[%s1 + $0x18] sm:$0xff]
    %v47 = vld [vmem:[%s1 + $0x20] sm:$0xff]
    %v48 = vld [vmem:[%s1 + $0x28] sm:$0xff]
    %v49 = vld [vmem:[%s1 + $0x30] sm:$0xff]
    %v50 = vld [vmem:[%s1 + $0x38] sm:$0xff]
    %v51 = vld [vmem:[%s2] sm:$0xff]
    %v52 = vld [vmem:[%s2 + $0x8] sm:$0xff]
    %v53 = vld [vmem:[%s2 + $0x10] sm:$0xff]
    %v54 = vld [vmem:[%s2 + $0x18] sm:$0xff]
    %v55 = vld [vmem:[%s2 + $0x20] sm:$0xff]
    %v56 = vld [vmem:[%s2 + $0x28] sm:$0xff]
    %v57 = vld [vmem:[%s2 + $0x30] sm:$0xff]
    %v58 = vld [vmem:[%s2 + $0x38] sm:$0xff]
    %60 = vset.pattern.permute.xlu0 0
    %61 = vperm.xlu0 %60, %v51
    %v62 = vpop.permute.xlu0 %61
    %65 = vset.pattern.permute.xlu0 0
    %66 = vperm.xlu0 %65, %v52
    %v67 = vpop.permute.xlu0 %66
    %70 = vset.pattern.permute.xlu0 0
    %71 = vperm.xlu0 %70, %v53
    %v72 = vpop.permute.xlu0 %71
    %75 = vset.pattern.permute.xlu0 0
    %76 = vperm.xlu0 %75, %v54
    %v77 = vpop.permute.xlu0 %76
    %80 = vset.pattern.permute.xlu0 0
    %81 = vperm.xlu0 %80, %v55
    %v82 = vpop.permute.xlu0 %81
    %85 = vset.pattern.permute.xlu0 0
    %86 = vperm.xlu0 %85, %v56
    %v87 = vpop.permute.xlu0 %86
    %90 = vset.pattern.permute.xlu0 0
    %91 = vperm.xlu0 %90, %v57
    %v92 = vpop.permute.xlu0 %91
    %95 = vset.pattern.permute.xlu0 0
    %96 = vperm.xlu0 %95, %v58
    %v97 = vpop.permute.xlu0 %96
    %vm99 = vcmask 130048
    %v101 = vsel %vm99, %v43, 0
    %v104 = vsel %vm99, %v44, 0
    %v107 = vsel %vm99, %v45, 0
    %v110 = vsel %vm99, %v46, 0
    %v113 = vsel %vm99, %v47, 0
    %v116 = vsel %vm99, %v48, 0
    %v119 = vsel %vm99, %v49, 0
    %v122 = vsel %vm99, %v50, 0
    %v125 = vsel %vm99, %v27, 0
    %v128 = vsel %vm99, %v28, 0
    %v131 = vsel %vm99, %v29, 0
    %v134 = vsel %vm99, %v30, 0
    %v137 = vsel %vm99, %v31, 0
    %v140 = vsel %vm99, %v32, 0
    %v143 = vsel %vm99, %v33, 0
    %v146 = vsel %vm99, %v34, 0
    %v149 = vsel %vm99, %v35, 0
    %v152 = vsel %vm99, %v36, 0
    %v155 = vsel %vm99, %v37, 0
    %v158 = vsel %vm99, %v38, 0
    %v161 = vsel %vm99, %v39, 0
    %v164 = vsel %vm99, %v40, 0
    %v167 = vsel %vm99, %v41, 0
    %v170 = vsel %vm99, %v42, 0
    %172 = vmatprep.subr.mxu0 0.0
    %173 = vmatpush1.xpose.msra.mxu0 %v170
    %174 = vmatprep.subr.mxu0 0.0
    %175 = vmatpush1.xpose.msra.mxu0 %v167
    %176 = vmatprep.subr.mxu0 0.0
    %177 = vmatpush1.xpose.msra.mxu0 %v164
    %178 = vmatprep.subr.mxu0 0.0
    %179 = vmatpush1.xpose.msra.mxu0 %v161
    %180 = vmatprep.subr.mxu0 0.0
    %181 = vmatpush1.xpose.msra.mxu0 %v158
    %182 = vmatprep.subr.mxu0 0.0
    %183 = vmatpush1.xpose.msra.mxu0 %v155
    %184 = vmatprep.subr.mxu0 0.0
    %185 = vmatpush1.xpose.msra.mxu0 %v152
    %186 = vmatprep.subr.mxu0 0.0
    %187 = vmatpush1.xpose.msra.mxu0 %v149
    %188 = vmatprep.subr.mxu0 0.0
    %189 = vmatpush1.xpose.msra.mxu0 %v146
    %190 = vmatprep.subr.mxu0 0.0
    %191 = vmatpush1.xpose.msra.mxu0 %v143
    %192 = vmatprep.subr.mxu0 0.0
    %193 = vmatpush1.xpose.msra.mxu0 %v140
    %194 = vmatprep.subr.mxu0 0.0
    %195 = vmatpush1.xpose.msra.mxu0 %v137
    %196 = vmatprep.subr.mxu0 0.0
    %197 = vmatpush1.xpose.msra.mxu0 %v134
    %198 = vmatprep.subr.mxu0 0.0
    %199 = vmatpush1.xpose.msra.mxu0 %v131
    %200 = vmatprep.subr.mxu0 0.0
    %201 = vmatpush1.xpose.msra.mxu0 %v128
    %202 = vmatprep.subr.mxu0 0.0
    %203 = vmatpush1.xpose.msra.mxu0 %v125
    %204 = vmatprep.subr.mxu0 0.0
    %205 = vmatpush2.xpose.msra.mxu0 0.0
    %206 = vmatprep.subr.mxu0 0.0
    %207 = vmatpush2.xpose.msra.mxu0 0.0
    %208 = vmatprep.subr.mxu0 0.0
    %209 = vmatpush2.xpose.msra.mxu0 0.0
    %210 = vmatprep.subr.mxu0 0.0
    %211 = vmatpush2.xpose.msra.mxu0 0.0
    %212 = vmatprep.subr.mxu0 0.0
    %213 = vmatpush2.xpose.msra.mxu0 0.0
    %214 = vmatprep.subr.mxu0 0.0
    %215 = vmatpush2.xpose.msra.mxu0 0.0
    %216 = vmatprep.subr.mxu0 0.0
    %217 = vmatpush2.xpose.msra.mxu0 0.0
    %218 = vmatprep.subr.mxu0 0.0
    %219 = vmatpush2.xpose.msra.mxu0 0.0
    %220 = vmatprep.subr.mxu0 0.0
    %221 = vmatpush2.xpose.msra.mxu0 0.0
    %222 = vmatprep.subr.mxu0 0.0
    %223 = vmatpush2.xpose.msra.mxu0 0.0
    %224 = vmatprep.subr.mxu0 0.0
    %225 = vmatpush2.xpose.msra.mxu0 0.0
    %226 = vmatprep.subr.mxu0 0.0
    %227 = vmatpush2.xpose.msra.mxu0 0.0
    %228 = vmatprep.subr.mxu0 0.0
    %229 = vmatpush2.xpose.msra.mxu0 0.0
    %230 = vmatprep.subr.mxu0 0.0
    %231 = vmatpush2.xpose.msra.mxu0 0.0
    %232 = vmatprep.subr.mxu0 0.0
    %233 = vmatpush2.xpose.msra.mxu0 0.0
    %234 = vmatprep.subr.mxu0 0.0
    %235 = vmatpush2.xpose.msra.mxu0 0.0
    %236 = vmatprep.mubr.f32.mxu0 0.0
    %237 = vmatmul.mubr.f32.gmra.mxu0 %v101
    %v238 = vpop.f32.mrf.mxu0
    %v239 = vadd.f32 %v62, %v238
    %v240 = vpop.f32.mrf.mxu0
    %241 = vmatprep.mubr.f32.mxu0 0.0
    %242 = vmatmul.mubr.f32.gmra.mxu0 %v104
    %v243 = vpop.f32.mrf.mxu0
    %v244 = vadd.f32 %v67, %v243
    %v245 = vpop.f32.mrf.mxu0
    %246 = vmatprep.mubr.f32.mxu0 0.0
    %247 = vmatmul.mubr.f32.gmra.mxu0 %v107
    %v248 = vpop.f32.mrf.mxu0
    %v249 = vadd.f32 %v72, %v248
    %v250 = vpop.f32.mrf.mxu0
    %251 = vmatprep.mubr.f32.mxu0 0.0
    %252 = vmatmul.mubr.f32.gmra.mxu0 %v110
    %v253 = vpop.f32.mrf.mxu0
    %v254 = vadd.f32 %v77, %v253
    %v255 = vpop.f32.mrf.mxu0
    %256 = vmatprep.mubr.f32.mxu0 0.0
    %257 = vmatmul.mubr.f32.gmra.mxu0 %v113
    %v258 = vpop.f32.mrf.mxu0
    %v259 = vadd.f32 %v82, %v258
    %v260 = vpop.f32.mrf.mxu0
    %261 = vmatprep.mubr.f32.mxu0 0.0
    %262 = vmatmul.mubr.f32.gmra.mxu0 %v116
    %v263 = vpop.f32.mrf.mxu0
    %v264 = vadd.f32 %v87, %v263
    %v265 = vpop.f32.mrf.mxu0
    %266 = vmatprep.mubr.f32.mxu0 0.0
    %267 = vmatmul.mubr.f32.gmra.mxu0 %v119
    %v268 = vpop.f32.mrf.mxu0
    %v269 = vadd.f32 %v92, %v268
    %v270 = vpop.f32.mrf.mxu0
    %271 = vmatprep.mubr.f32.mxu0 0.0
    %272 = vmatmul.mubr.f32.gmra.mxu0 %v122
    %v273 = vpop.f32.mrf.mxu0
    %v274 = vadd.f32 %v97, %v273
    %v275 = vpop.f32.mrf.mxu0
    %276 = vdwg.mxu0
    %v277 = vmax.f32 %v239, 0.0
    %v278 = vmax.f32 %v244, 0.0
    %v279 = vmax.f32 %v249, 0.0
    %v280 = vmax.f32 %v254, 0.0
    %v281 = vmax.f32 %v259, 0.0
    %v282 = vmax.f32 %v264, 0.0
    %v283 = vmax.f32 %v269, 0.0
    %v284 = vmax.f32 %v274, 0.0
    %v285 = vld [vmem:[%s3] sm:$0xff]
    %v286 = vld [vmem:[%s3 + $0x8] sm:$0xff]
    %v287 = vld [vmem:[%s3 + $0x10] sm:$0xff]
    %v288 = vld [vmem:[%s3 + $0x18] sm:$0xff]
    %v289 = vld [vmem:[%s3 + $0x20] sm:$0xff]
    %v290 = vld [vmem:[%s3 + $0x28] sm:$0xff]
    %v291 = vld [vmem:[%s3 + $0x30] sm:$0xff]
    %v292 = vld [vmem:[%s3 + $0x38] sm:$0xff]
    %v293 = vld [vmem:[%s4] sm:$0xff]
    %v294 = vld [vmem:[%s4 + $0x8] sm:$0xff]
    %v295 = vld [vmem:[%s4 + $0x10] sm:$0xff]
    %v296 = vld [vmem:[%s4 + $0x18] sm:$0xff]
    %v297 = vld [vmem:[%s4 + $0x20] sm:$0xff]
    %v298 = vld [vmem:[%s4 + $0x28] sm:$0xff]
    %v299 = vld [vmem:[%s4 + $0x30] sm:$0xff]
    %v300 = vld [vmem:[%s4 + $0x38] sm:$0xff]
    %302 = vset.pattern.permute.xlu0 0
    %303 = vperm.xlu0 %302, %v293
    %v304 = vpop.permute.xlu0 %303
    %307 = vset.pattern.permute.xlu0 0
    %308 = vperm.xlu0 %307, %v294
    %v309 = vpop.permute.xlu0 %308
    %312 = vset.pattern.permute.xlu0 0
    %313 = vperm.xlu0 %312, %v295
    %v314 = vpop.permute.xlu0 %313
    %317 = vset.pattern.permute.xlu0 0
    %318 = vperm.xlu0 %317, %v296
    %v319 = vpop.permute.xlu0 %318
    %322 = vset.pattern.permute.xlu0 0
    %323 = vperm.xlu0 %322, %v297
    %v324 = vpop.permute.xlu0 %323
    %327 = vset.pattern.permute.xlu0 0
    %328 = vperm.xlu0 %327, %v298
    %v329 = vpop.permute.xlu0 %328
    %332 = vset.pattern.permute.xlu0 0
    %333 = vperm.xlu0 %332, %v299
    %v334 = vpop.permute.xlu0 %333
    %337 = vset.pattern.permute.xlu0 0
    %338 = vperm.xlu0 %337, %v300
    %v339 = vpop.permute.xlu0 %338
    %vm341 = vcmask 523264
    %v343 = vsel %vm341, %v285, 0
    %v346 = vsel %vm341, %v286, 0
    %v349 = vsel %vm341, %v287, 0
    %v352 = vsel %vm341, %v288, 0
    %v355 = vsel %vm341, %v289, 0
    %v358 = vsel %vm341, %v290, 0
    %v361 = vsel %vm341, %v291, 0
    %v364 = vsel %vm341, %v292, 0
    %366 = vmatprep.subr.mxu0 0.0
    %367 = vmatpush1.msra.mxu0 0.0
    %368 = vmatprep.subr.mxu0 0.0
    %369 = vmatpush1.msra.mxu0 0.0
    %370 = vmatprep.subr.mxu0 0.0
    %371 = vmatpush1.msra.mxu0 0.0
    %372 = vmatprep.subr.mxu0 0.0
    %373 = vmatpush1.msra.mxu0 0.0
    %374 = vmatprep.subr.mxu0 0.0
    %375 = vmatpush1.msra.mxu0 0.0
    %376 = vmatprep.subr.mxu0 0.0
    %377 = vmatpush1.msra.mxu0 0.0
    %378 = vmatprep.subr.mxu0 0.0
    %379 = vmatpush1.msra.mxu0 0.0
    %380 = vmatprep.subr.mxu0 0.0
    %381 = vmatpush1.msra.mxu0 0.0
    %382 = vmatprep.subr.mxu0 0.0
    %383 = vmatpush1.msra.mxu0 %v284
    %384 = vmatprep.subr.mxu0 0.0
    %385 = vmatpush1.msra.mxu0 %v283
    %386 = vmatprep.subr.mxu0 0.0
    %387 = vmatpush1.msra.mxu0 %v282
    %388 = vmatprep.subr.mxu0 0.0
    %389 = vmatpush1.msra.mxu0 %v281
    %390 = vmatprep.subr.mxu0 0.0
    %391 = vmatpush1.msra.mxu0 %v280
    %392 = vmatprep.subr.mxu0 0.0
    %393 = vmatpush1.msra.mxu0 %v279
    %394 = vmatprep.subr.mxu0 0.0
    %395 = vmatpush1.msra.mxu0 %v278
    %396 = vmatprep.subr.mxu0 0.0
    %397 = vmatpush1.msra.mxu0 %v277
    %398 = vmatprep.subr.mxu0 0.0
    %399 = vmatpush2.msra.mxu0 0.0
    %400 = vmatprep.subr.mxu0 0.0
    %401 = vmatpush2.msra.mxu0 0.0
    %402 = vmatprep.subr.mxu0 0.0
    %403 = vmatpush2.msra.mxu0 0.0
    %404 = vmatprep.subr.mxu0 0.0
    %405 = vmatpush2.msra.mxu0 0.0
    %406 = vmatprep.subr.mxu0 0.0
    %407 = vmatpush2.msra.mxu0 0.0
    %408 = vmatprep.subr.mxu0 0.0
    %409 = vmatpush2.msra.mxu0 0.0
    %410 = vmatprep.subr.mxu0 0.0
    %411 = vmatpush2.msra.mxu0 0.0
    %412 = vmatprep.subr.mxu0 0.0
    %413 = vmatpush2.msra.mxu0 0.0
    %414 = vmatprep.subr.mxu0 0.0
    %415 = vmatpush2.msra.mxu0 0.0
    %416 = vmatprep.subr.mxu0 0.0
    %417 = vmatpush2.msra.mxu0 0.0
    %418 = vmatprep.subr.mxu0 0.0
    %419 = vmatpush2.msra.mxu0 0.0
    %420 = vmatprep.subr.mxu0 0.0
    %421 = vmatpush2.msra.mxu0 0.0
    %422 = vmatprep.subr.mxu0 0.0
    %423 = vmatpush2.msra.mxu0 0.0
    %424 = vmatprep.subr.mxu0 0.0
    %425 = vmatpush2.msra.mxu0 0.0
    %426 = vmatprep.subr.mxu0 0.0
    %427 = vmatpush2.msra.mxu0 0.0
    %428 = vmatprep.subr.mxu0 0.0
    %429 = vmatpush2.msra.mxu0 0.0
    %430 = vmatprep.mubr.f32.mxu0 0.0
    %431 = vmatmul.mubr.f32.gmra.mxu0 %v343
    %v432 = vpop.f32.mrf.mxu0
    %v433 = vadd.f32 %v304, %v432
    %v434 = vpop.f32.mrf.mxu0
    %435 = vmatprep.mubr.f32.mxu0 0.0
    %436 = vmatmul.mubr.f32.gmra.mxu0 %v346
    %v437 = vpop.f32.mrf.mxu0
    %v438 = vadd.f32 %v309, %v437
    %v439 = vpop.f32.mrf.mxu0
    %440 = vmatprep.mubr.f32.mxu0 0.0
    %441 = vmatmul.mubr.f32.gmra.mxu0 %v349
    %v442 = vpop.f32.mrf.mxu0
    %v443 = vadd.f32 %v314, %v442
    %v444 = vpop.f32.mrf.mxu0
    %445 = vmatprep.mubr.f32.mxu0 0.0
    %446 = vmatmul.mubr.f32.gmra.mxu0 %v352
    %v447 = vpop.f32.mrf.mxu0
    %v448 = vadd.f32 %v319, %v447
    %v449 = vpop.f32.mrf.mxu0
    %450 = vmatprep.mubr.f32.mxu0 0.0
    %451 = vmatmul.mubr.f32.gmra.mxu0 %v355
    %v452 = vpop.f32.mrf.mxu0
    %v453 = vadd.f32 %v324, %v452
    %v454 = vpop.f32.mrf.mxu0
    %455 = vmatprep.mubr.f32.mxu0 0.0
    %456 = vmatmul.mubr.f32.gmra.mxu0 %v358
    %v457 = vpop.f32.mrf.mxu0
    %v458 = vadd.f32 %v329, %v457
    %v459 = vpop.f32.mrf.mxu0
    %460 = vmatprep.mubr.f32.mxu0 0.0
    %461 = vmatmul.mubr.f32.gmra.mxu0 %v361
    %v462 = vpop.f32.mrf.mxu0
    %v463 = vadd.f32 %v334, %v462
    %v464 = vpop.f32.mrf.mxu0
    %465 = vmatprep.mubr.f32.mxu0 0.0
    %466 = vmatmul.mubr.f32.gmra.mxu0 %v364
    %v467 = vpop.f32.mrf.mxu0
    %v468 = vadd.f32 %v339, %v467
    %v469 = vpop.f32.mrf.mxu0
    %470 = vdwg.mxu0
    %v471 = vmax.f32 %v433, 0.0
    %v472 = vmax.f32 %v438, 0.0
    %v473 = vmax.f32 %v443, 0.0
    %v474 = vmax.f32 %v448, 0.0
    %v475 = vmax.f32 %v453, 0.0
    %v476 = vmax.f32 %v458, 0.0
    %v477 = vmax.f32 %v463, 0.0
    %v478 = vmax.f32 %v468, 0.0
    %v479 = vld [vmem:[%s5] sm:$0xf]
    %v480 = vld [vmem:[%s6] sm:$0xf]
    %482 = vset.pattern.permute.xlu0 0
    %483 = vperm.xlu0 %482, %v480
    %v484 = vpop.permute.xlu0 %483
    %v487 = vsel %vm341, %v479, 0
    %489 = vmatprep.subr.mxu0 0.0
    %490 = vmatpush1.msra.mxu0 0.0
    %491 = vmatprep.subr.mxu0 0.0
    %492 = vmatpush1.msra.mxu0 0.0
    %493 = vmatprep.subr.mxu0 0.0
    %494 = vmatpush1.msra.mxu0 0.0
    %495 = vmatprep.subr.mxu0 0.0
    %496 = vmatpush1.msra.mxu0 0.0
    %497 = vmatprep.subr.mxu0 0.0
    %498 = vmatpush1.msra.mxu0 0.0
    %499 = vmatprep.subr.mxu0 0.0
    %500 = vmatpush1.msra.mxu0 0.0
    %501 = vmatprep.subr.mxu0 0.0
    %502 = vmatpush1.msra.mxu0 0.0
    %503 = vmatprep.subr.mxu0 0.0
    %504 = vmatpush1.msra.mxu0 0.0
    %505 = vmatprep.subr.mxu0 0.0
    %506 = vmatpush1.msra.mxu0 %v478
    %507 = vmatprep.subr.mxu0 0.0
    %508 = vmatpush1.msra.mxu0 %v477
    %509 = vmatprep.subr.mxu0 0.0
    %510 = vmatpush1.msra.mxu0 %v476
    %511 = vmatprep.subr.mxu0 0.0
    %512 = vmatpush1.msra.mxu0 %v475
    %513 = vmatprep.subr.mxu0 0.0
    %514 = vmatpush1.msra.mxu0 %v474
    %515 = vmatprep.subr.mxu0 0.0
    %516 = vmatpush1.msra.mxu0 %v473
    %517 = vmatprep.subr.mxu0 0.0
    %518 = vmatpush1.msra.mxu0 %v472
    %519 = vmatprep.subr.mxu0 0.0
    %520 = vmatpush1.msra.mxu0 %v471
    %521 = vmatprep.subr.mxu0 0.0
    %522 = vmatpush2.msra.mxu0 0.0
    %523 = vmatprep.subr.mxu0 0.0
    %524 = vmatpush2.msra.mxu0 0.0
    %525 = vmatprep.subr.mxu0 0.0
    %526 = vmatpush2.msra.mxu0 0.0
    %527 = vmatprep.subr.mxu0 0.0
    %528 = vmatpush2.msra.mxu0 0.0
    %529 = vmatprep.subr.mxu0 0.0
    %530 = vmatpush2.msra.mxu0 0.0
    %531 = vmatprep.subr.mxu0 0.0
    %532 = vmatpush2.msra.mxu0 0.0
    %533 = vmatprep.subr.mxu0 0.0
    %534 = vmatpush2.msra.mxu0 0.0
    %535 = vmatprep.subr.mxu0 0.0
    %536 = vmatpush2.msra.mxu0 0.0
    %537 = vmatprep.subr.mxu0 0.0
    %538 = vmatpush2.msra.mxu0 0.0
    %539 = vmatprep.subr.mxu0 0.0
    %540 = vmatpush2.msra.mxu0 0.0
    %541 = vmatprep.subr.mxu0 0.0
    %542 = vmatpush2.msra.mxu0 0.0
    %543 = vmatprep.subr.mxu0 0.0
    %544 = vmatpush2.msra.mxu0 0.0
    %545 = vmatprep.subr.mxu0 0.0
    %546 = vmatpush2.msra.mxu0 0.0
    %547 = vmatprep.subr.mxu0 0.0
    %548 = vmatpush2.msra.mxu0 0.0
    %549 = vmatprep.subr.mxu0 0.0
    %550 = vmatpush2.msra.mxu0 0.0
    %551 = vmatprep.subr.mxu0 0.0
    %552 = vmatpush2.msra.mxu0 0.0
    %553 = vmatprep.mubr.f32.mxu0 0.0
    %554 = vmatmul.mubr.f32.gmra.mxu0 %v487
    %v555 = vpop.f32.mrf.mxu0
    %v556 = vadd.f32 %v484, %v555
    %v557 = vpop.f32.mrf.mxu0
    %558 = vdwg.mxu0
    %559 = vst [vmem:[#allocation2] sm:$0xf] %v556
    // Predicated region
    $region30: #{tpu_custom_call.1} parent=1 // pred_check
      _
    $region31: #{tpu_custom_call.1} parent=1 // pred_check_branch
      %561 = sbr.rel (0) target = $region33
    $region32: #{tpu_custom_call.1} parent=1 // pred_region
      %s563 = ssub.s32 64, 64
      %564 = vsyncadd [#allocation3], %s563
      %s566 = sshll.u32 [#allocation2], 4
      %s567 = int_to_ptr.vmem [resolvable:$true] %s566
      %569 = dma.vmem_to_hbm [thread:$0]  %s567, 64, %s7, [#allocation3]
    $region33: #{tpu_custom_call.1} parent=1 // pred_fallthru
      _
    // Predicated region
    $region34: #{tpu_custom_call.1} parent=1 // pred_check
      _
    $region35: #{tpu_custom_call.1} parent=1 // pred_check_branch
      %571 = sbr.rel (0) target = $region37
    $region36: #{tpu_custom_call.1} parent=1 // pred_region
      %572 = dma.done [#allocation3], 64
    $region37: #{tpu_custom_call.1} parent=1 // pred_fallthru
      _
    %573 = vsyncpa [#allocation3], 1

</llo_original>
